<compile_context>
chip_gen: v6e
topology: v6e:2x2x1
jax: 0.10.0
libtpu: 0.0.40
codegen_flags: <defaults>
</compile_context>

<pallas_src>
import jax
import jax.numpy as jnp
from jax.experimental import pallas as pl
from jax.experimental.pallas import tpu as pltpu


def _round_up(n, m):
    return ((n + m - 1) // m) * m


def _cdiv(a, b):
    return -(-a // b)


def mlp_kernel(x_ref, w1_ref, b1_ref, w2_ref, b2_ref, w3_ref, b3_ref, o_ref):
    # Feature-major: x_ref is (in_features, TB) bf16, batch on lanes.
    # Weights are PyTorch-layout (out, in); biases are f32 (out, 1) columns.
    x = x_ref[...]
    # Linear(input -> hidden) + ReLU  (bf16 operands, f32 accumulation)
    h1 = jnp.dot(w1_ref[...], x, preferred_element_type=jnp.float32) + b1_ref[...]
    h1 = jnp.maximum(h1, 0.0)
    # Linear(hidden -> hidden//2) + ReLU
    h2 = jnp.dot(w2_ref[...], h1.astype(w2_ref.dtype),
                 preferred_element_type=jnp.float32) + b2_ref[...]
    h2 = jnp.maximum(h2, 0.0)
    # Linear(hidden//2 -> num_classes) -> lane-dense (NC_pad, TB) f32 store.
    o_ref[...] = jnp.dot(w3_ref[...], h2.astype(w3_ref.dtype),
                         preferred_element_type=jnp.float32) + b3_ref[...]


def behavior_classifier_forward(x, params, *, tb=2048, compute_dtype=jnp.bfloat16):
    """x: (B, in_features) f32. params in PyTorch layout: w (out, in), b (out,)."""
    w1, b1, w2, b2, w3, b3 = params
    B, in_features = x.shape
    hidden = w1.shape[0]
    half = w2.shape[0]
    num_classes = w3.shape[0]

    # Logits rows sublane-padded 2 -> 8 (cheap; sliced off outside).
    NC = _round_up(num_classes, 8)

    # Adaptive batch tile: multiple of 128, sized so B_pad stays close to B.
    B128 = _round_up(B, 128)
    n_steps = _cdiv(B128, tb)
    TB = _round_up(_cdiv(B128, n_steps), 128)
    B_pad = n_steps * TB

    cdt = compute_dtype
    # Single fused transpose+cast+pad pass: (B, in) f32 -> (in, B_pad) bf16.
    x_t = jnp.zeros((in_features, B_pad), cdt).at[:, :B].set(x.T.astype(cdt))

    w1_c = w1.astype(cdt)                                    # (hidden, in)
    w2_c = w2.astype(cdt)                                    # (half, hidden)
    w3_c = jnp.zeros((NC, half), cdt).at[:num_classes, :].set(w3.astype(cdt))
    b1_c = b1.astype(jnp.float32).reshape(hidden, 1)
    b2_c = b2.astype(jnp.float32).reshape(half, 1)
    b3_c = jnp.zeros((NC, 1), jnp.float32).at[:num_classes, :].set(
        b3.astype(jnp.float32).reshape(num_classes, 1))

    resident = lambda i: (0, 0)   # grid-invariant: weights/biases DMA'd once, stay in VMEM

    itemsize = jnp.dtype(cdt).itemsize
    flops = 2 * B_pad * (in_features * hidden + hidden * half + half * NC)
    bytes_accessed = (
        x_t.size * itemsize
        + (w1_c.size + w2_c.size + w3_c.size) * itemsize
        + (b1_c.size + b2_c.size + b3_c.size) * 4
        + NC * B_pad * 4
    )

    out = pl.pallas_call(
        mlp_kernel,
        out_shape=jax.ShapeDtypeStruct((NC, B_pad), jnp.float32),
        grid=(n_steps,),
        in_specs=[
            pl.BlockSpec((in_features, TB), lambda i: (0, i)),   # x^T tile, streamed over batch lanes
            pl.BlockSpec((hidden, in_features), resident),       # w1 (out, in)
            pl.BlockSpec((hidden, 1), resident),                  # b1
            pl.BlockSpec((half, hidden), resident),                # w2
            pl.BlockSpec((half, 1), resident),                     # b2
            pl.BlockSpec((NC, half), resident),                    # w3 (rows padded to 8)
            pl.BlockSpec((NC, 1), resident),                       # b3
        ],
        out_specs=pl.BlockSpec((NC, TB), lambda i: (0, i)),
        compiler_params=pltpu.CompilerParams(dimension_semantics=("parallel",)),
        cost_estimate=pl.CostEstimate(
            flops=flops, transcendentals=0, bytes_accessed=bytes_accessed),
    )(x_t, w1_c, b1_c, w2_c, b2_c, w3_c, b3_c)

    # Slice away logits-row padding and batch-lane padding; back to (B, num_classes).
    return out[:num_classes, :B].T


def init_params(key, input_size=8, hidden_size=64, num_classes=2):
    # Deterministic synthetic init, PyTorch nn.Linear layout: w (out, in), b (out,).
    ks = jax.random.split(key, 6)

    def lin(kw, kb, fan_in, fan_out):
        bound = 1.0 / jnp.sqrt(fan_in)
        w = jax.random.uniform(kw, (fan_out, fan_in), jnp.float32, -bound, bound)
        b = jax.random.uniform(kb, (fan_out,), jnp.float32, -bound, bound)
        return w, b

    w1, b1 = lin(ks[0], ks[1], input_size, hidden_size)
    w2, b2 = lin(ks[2], ks[3], hidden_size, hidden_size // 2)
    w3, b3 = lin(ks[4], ks[5], hidden_size // 2, num_classes)
    return (w1, b1, w2, b2, w3, b3)


def reference_forward(x, params):
    w1, b1, w2, b2, w3, b3 = params
    h1 = jnp.maximum(x @ w1.T + b1, 0.0)
    h2 = jnp.maximum(h1 @ w2.T + b2, 0.0)
    return h2 @ w3.T + b3


if __name__ == "__main__":
    key = jax.random.PRNGKey(0)
    k_x, k_p = jax.random.split(key)

    B, INPUT, HIDDEN, CLASSES = 8, 8, 64, 2
    x = jax.random.normal(k_x, (B, INPUT), jnp.float32)
    params = init_params(k_p, INPUT, HIDDEN, CLASSES)

    out = jax.jit(behavior_classifier_forward)(x, params)
    out = jax.block_until_ready(out)

    ref = reference_forward(x, params)  # f32 reference; kernel uses bf16 operands
    assert out.shape == (B, CLASSES)
    assert jnp.allclose(out, ref, atol=5e-2, rtol=5e-2), float(jnp.max(jnp.abs(out - ref)))

    print("KERNEL_OK")
</pallas_src>

<mosaic_0001>
module attributes {stable_mosaic.version = 11 : i64} {
  func.func @mlp_kernel(%arg0: i32, %arg1: memref<8x128xbf16, #tpu.memory_space<vmem>>, %arg2: memref<64x8xbf16, #tpu.memory_space<vmem>>, %arg3: memref<64x1xf32, #tpu.memory_space<vmem>>, %arg4: memref<32x64xbf16, #tpu.memory_space<vmem>>, %arg5: memref<32x1xf32, #tpu.memory_space<vmem>>, %arg6: memref<8x32xbf16, #tpu.memory_space<vmem>>, %arg7: memref<8x1xf32, #tpu.memory_space<vmem>>, %arg8: memref<8x128xf32, #tpu.memory_space<vmem>>) attributes {dimension_semantics = [#tpu.dimension_semantics<parallel>], iteration_bounds = array<i64: 1>, scalar_prefetch = 0 : i64, scratch_operands = 0 : i64, tpu.core_type = #tpu.core_type<tc>, window_params = [{transform_indices = @transform_0, window_bounds = array<i64: 8, 128>}, {pipeline_mode = #tpu.pipeline_mode<synchronous>, transform_indices = @transform_1, window_bounds = array<i64: 64, 8>}, {pipeline_mode = #tpu.pipeline_mode<synchronous>, transform_indices = @transform_2, window_bounds = array<i64: 64, 1>}, {pipeline_mode = #tpu.pipeline_mode<synchronous>, transform_indices = @transform_3, window_bounds = array<i64: 32, 64>}, {pipeline_mode = #tpu.pipeline_mode<synchronous>, transform_indices = @transform_4, window_bounds = array<i64: 32, 1>}, {pipeline_mode = #tpu.pipeline_mode<synchronous>, transform_indices = @transform_5, window_bounds = array<i64: 8, 32>}, {pipeline_mode = #tpu.pipeline_mode<synchronous>, transform_indices = @transform_6, window_bounds = array<i64: 8, 1>}, {transform_indices = @transform_7, window_bounds = array<i64: 8, 128>}]} {
    %c0 = arith.constant 0 : index
    %c0_0 = arith.constant 0 : index
    %0 = vector.load %arg1[%c0, %c0_0] : memref<8x128xbf16, #tpu.memory_space<vmem>>, vector<8x128xbf16>
    %c0_1 = arith.constant 0 : index
    %c0_2 = arith.constant 0 : index
    %1 = vector.load %arg2[%c0_1, %c0_2] : memref<64x8xbf16, #tpu.memory_space<vmem>>, vector<64x8xbf16>
    %cst = arith.constant dense<0.000000e+00> : vector<64x128xf32>
    %2 = tpu.matmul %1, %0, %cst {dimension_numbers = #tpu.dot_dimension_numbers<[1], [0], [0], [1], [0, 0, 1, 1], [], []>} : vector<64x8xbf16>, vector<8x128xbf16>, vector<64x128xf32> -> vector<64x128xf32>
    %c0_3 = arith.constant 0 : index
    %c0_4 = arith.constant 0 : index
    %3 = vector.load %arg3[%c0_3, %c0_4] : memref<64x1xf32, #tpu.memory_space<vmem>>, vector<64x1xf32>
    %4 = vector.broadcast %3 : vector<64x1xf32> to vector<64x128xf32>
    %5 = arith.addf %2, %4 : vector<64x128xf32>
    %cst_5 = arith.constant 0.000000e+00 : f32
    %6 = vector.broadcast %cst_5 : f32 to vector<64x128xf32>
    %7 = arith.maximumf %5, %6 : vector<64x128xf32>
    %c0_6 = arith.constant 0 : index
    %c0_7 = arith.constant 0 : index
    %8 = vector.load %arg4[%c0_6, %c0_7] : memref<32x64xbf16, #tpu.memory_space<vmem>>, vector<32x64xbf16>
    %9 = arith.truncf %7 : vector<64x128xf32> to vector<64x128xbf16>
    %cst_8 = arith.constant dense<0.000000e+00> : vector<32x128xf32>
    %10 = tpu.matmul %8, %9, %cst_8 {dimension_numbers = #tpu.dot_dimension_numbers<[1], [0], [0], [1], [0, 0, 1, 1], [], []>} : vector<32x64xbf16>, vector<64x128xbf16>, vector<32x128xf32> -> vector<32x128xf32>
    %c0_9 = arith.constant 0 : index
    %c0_10 = arith.constant 0 : index
    %11 = vector.load %arg5[%c0_9, %c0_10] : memref<32x1xf32, #tpu.memory_space<vmem>>, vector<32x1xf32>
    %12 = vector.broadcast %11 : vector<32x1xf32> to vector<32x128xf32>
    %13 = arith.addf %10, %12 : vector<32x128xf32>
    %cst_11 = arith.constant 0.000000e+00 : f32
    %14 = vector.broadcast %cst_11 : f32 to vector<32x128xf32>
    %15 = arith.maximumf %13, %14 : vector<32x128xf32>
    %c0_12 = arith.constant 0 : index
    %c0_13 = arith.constant 0 : index
    %16 = vector.load %arg6[%c0_12, %c0_13] : memref<8x32xbf16, #tpu.memory_space<vmem>>, vector<8x32xbf16>
    %17 = arith.truncf %15 : vector<32x128xf32> to vector<32x128xbf16>
    %cst_14 = arith.constant dense<0.000000e+00> : vector<8x128xf32>
    %18 = tpu.matmul %16, %17, %cst_14 {dimension_numbers = #tpu.dot_dimension_numbers<[1], [0], [0], [1], [0, 0, 1, 1], [], []>} : vector<8x32xbf16>, vector<32x128xbf16>, vector<8x128xf32> -> vector<8x128xf32>
    %c0_15 = arith.constant 0 : index
    %c0_16 = arith.constant 0 : index
    %19 = vector.load %arg7[%c0_15, %c0_16] : memref<8x1xf32, #tpu.memory_space<vmem>>, vector<8x1xf32>
    %20 = vector.broadcast %19 : vector<8x1xf32> to vector<8x128xf32>
    %21 = arith.addf %18, %20 : vector<8x128xf32>
    %c0_17 = arith.constant 0 : index
    %c0_18 = arith.constant 0 : index
    %22 = vector.load %arg8[%c0_17, %c0_18] : memref<8x128xf32, #tpu.memory_space<vmem>>, vector<8x128xf32>
    tpu.vector_store %arg8[%c0_17, %c0_18], %21 {strides = array<i32>} : memref<8x128xf32, #tpu.memory_space<vmem>>, vector<8x128xf32>,
    return
  }
  func.func @transform_0(%arg0: i32) -> (i32, i32) {
    %c0_i32 = arith.constant 0 : i32
    %c0_i32_0 = arith.constant 0 : i32
    return %c0_i32, %arg0 : i32, i32
  }
  func.func @transform_1(%arg0: i32) -> (i32, i32) {
    %c0_i32 = arith.constant 0 : i32
    %c0_i32_0 = arith.constant 0 : i32
    %c0_i32_1 = arith.constant 0 : i32
    return %c0_i32, %c0_i32_0 : i32, i32
  }
  func.func @transform_2(%arg0: i32) -> (i32, i32) {
    %c0_i32 = arith.constant 0 : i32
    %c0_i32_0 = arith.constant 0 : i32
    %c0_i32_1 = arith.constant 0 : i32
    return %c0_i32, %c0_i32_0 : i32, i32
  }
  func.func @transform_3(%arg0: i32) -> (i32, i32) {
    %c0_i32 = arith.constant 0 : i32
    %c0_i32_0 = arith.constant 0 : i32
    %c0_i32_1 = arith.constant 0 : i32
    return %c0_i32, %c0_i32_0 : i32, i32
  }
  func.func @transform_4(%arg0: i32) -> (i32, i32) {
    %c0_i32 = arith.constant 0 : i32
    %c0_i32_0 = arith.constant 0 : i32
    %c0_i32_1 = arith.constant 0 : i32
    return %c0_i32, %c0_i32_0 : i32, i32
  }
  func.func @transform_5(%arg0: i32) -> (i32, i32) {
    %c0_i32 = arith.constant 0 : i32
    %c0_i32_0 = arith.constant 0 : i32
    %c0_i32_1 = arith.constant 0 : i32
    return %c0_i32, %c0_i32_0 : i32, i32
  }
  func.func @transform_6(%arg0: i32) -> (i32, i32) {
    %c0_i32 = arith.constant 0 : i32
    %c0_i32_0 = arith.constant 0 : i32
    %c0_i32_1 = arith.constant 0 : i32
    return %c0_i32, %c0_i32_0 : i32, i32
  }
  func.func @transform_7(%arg0: i32) -> (i32, i32) {
    %c0_i32 = arith.constant 0 : i32
    %c0_i32_0 = arith.constant 0 : i32
    return %c0_i32, %arg0 : i32, i32
  }
}

</mosaic_0001>

<llo_original>
// kernel: behavior_classifier_forward.1
$region0: #{behavior_classifier_forward.1}
  #allocation0 [shape = 'u32[]', space=smem, size = 0x4, offset = 0x4, fixed_abs, tag = 'smem constant byte address 0x4 - core index']
  #allocation1 [shape = 'u32[144,128]{1,0:T(1,128)}', space=vmem, size = 0x12000, scoped, tag = 'internal scratch']
  %s0 = inlined_call_operand.vmem [shape: bf16[8,128], index: 0, kind: input, shape index: {}]
  %s1 = inlined_call_operand.vmem [shape: bf16[64,8], index: 1, kind: input, shape index: {}]
  %s2 = inlined_call_operand.vmem [shape: f32[64,1], index: 2, kind: input, shape index: {}]
  %s3 = inlined_call_operand.vmem [shape: bf16[32,64], index: 3, kind: input, shape index: {}]
  %s4 = inlined_call_operand.vmem [shape: f32[32,1], index: 4, kind: input, shape index: {}]
  %s5 = inlined_call_operand.vmem [shape: bf16[8,32], index: 5, kind: input, shape index: {}]
  %s6 = inlined_call_operand.vmem [shape: f32[8,1], index: 6, kind: input, shape index: {}]
  %s7 = inlined_call_operand.vmem [shape: f32[8,128], index: 7, kind: output, shape index: {}]
  %s8 = sld [smem:[#allocation0]]
  $region38: #{behavior_classifier_forward.1} parent=0
    _
  %s10 = ssub.s32 1, %s8
  %s11 = scalar_select 0, %s10, %s8
  // Predicated region
  $region2: #{behavior_classifier_forward.1} parent=0 // pred_check
    _
  $region3: #{behavior_classifier_forward.1} parent=0 // pred_check_branch
    %13 = sbr.rel (0) target = $region5
  $region4: #{behavior_classifier_forward.1} parent=0 // pred_region
    _
  $region5: #{behavior_classifier_forward.1} parent=0 // pred_fallthru
    _
  // Predicated region
  $region6: #{behavior_classifier_forward.1} parent=0 // pred_check
    _
  $region7: #{behavior_classifier_forward.1} parent=0 // pred_check_branch
    %15 = sbr.rel (0) target = $region9
  $region8: #{behavior_classifier_forward.1} parent=0 // pred_region
    _
  $region9: #{behavior_classifier_forward.1} parent=0 // pred_fallthru
    _
  // Predicated region
  $region10: #{behavior_classifier_forward.1} parent=0 // pred_check
    _
  $region11: #{behavior_classifier_forward.1} parent=0 // pred_check_branch
    %17 = sbr.rel (0) target = $region13
  $region12: #{behavior_classifier_forward.1} parent=0 // pred_region
    _
  $region13: #{behavior_classifier_forward.1} parent=0 // pred_fallthru
    _
  // Predicated region
  $region14: #{behavior_classifier_forward.1} parent=0 // pred_check
    _
  $region15: #{behavior_classifier_forward.1} parent=0 // pred_check_branch
    %19 = sbr.rel (0) target = $region17
  $region16: #{behavior_classifier_forward.1} parent=0 // pred_region
    _
  $region17: #{behavior_classifier_forward.1} parent=0 // pred_fallthru
    _
  // Predicated region
  $region18: #{behavior_classifier_forward.1} parent=0 // pred_check
    _
  $region19: #{behavior_classifier_forward.1} parent=0 // pred_check_branch
    %21 = sbr.rel (0) target = $region21
  $region20: #{behavior_classifier_forward.1} parent=0 // pred_region
    _
  $region21: #{behavior_classifier_forward.1} parent=0 // pred_fallthru
    _
  // Predicated region
  $region22: #{behavior_classifier_forward.1} parent=0 // pred_check
    _
  $region23: #{behavior_classifier_forward.1} parent=0 // pred_check_branch
    %23 = sbr.rel (0) target = $region25
  $region24: #{behavior_classifier_forward.1} parent=0 // pred_region
    _
  $region25: #{behavior_classifier_forward.1} parent=0 // pred_fallthru
    _
  // Predicated region
  $region26: #{behavior_classifier_forward.1} parent=0 // pred_check
    _
  $region27: #{behavior_classifier_forward.1} parent=0 // pred_check_branch
    %25 = sbr.rel (0) target = $region29
  $region28: #{behavior_classifier_forward.1} parent=0 // pred_region
    _
  $region29: #{behavior_classifier_forward.1} parent=0 // pred_fallthru
    _
  %v27 = vld [vmem:[%s0] sm:$0xf]
  %v28 = vld [vmem:[%s1] sm:$0xf]
  %v29 = vld [vmem:[%s1 + $0x4] sm:$0xf]
  %v30 = vld [vmem:[%s1 + $0x8] sm:$0xf]
  %v31 = vld [vmem:[%s1 + $0xc] sm:$0xf]
  %v32 = vld [vmem:[%s1 + $0x10] sm:$0xf]
  %v33 = vld [vmem:[%s1 + $0x14] sm:$0xf]
  %v34 = vld [vmem:[%s1 + $0x18] sm:$0xf]
  %v35 = vld [vmem:[%s1 + $0x1c] sm:$0xf]
  %v36 = vld [vmem:[%s2] sm:$0xff]
  %v37 = vld [vmem:[%s2 + $0x8] sm:$0xff]
  %v38 = vld [vmem:[%s2 + $0x10] sm:$0xff]
  %v39 = vld [vmem:[%s2 + $0x18] sm:$0xff]
  %v40 = vld [vmem:[%s2 + $0x20] sm:$0xff]
  %v41 = vld [vmem:[%s2 + $0x28] sm:$0xff]
  %v42 = vld [vmem:[%s2 + $0x30] sm:$0xff]
  %v43 = vld [vmem:[%s2 + $0x38] sm:$0xff]
  %45 = vset.pattern.permute.xlu0 0
  %46 = vperm.xlu0 %45, %v36
  %v47 = vpop.permute.xlu0 %46
  %50 = vset.pattern.permute.xlu0 0
  %51 = vperm.xlu0 %50, %v37
  %v52 = vpop.permute.xlu0 %51
  %55 = vset.pattern.permute.xlu0 0
  %56 = vperm.xlu0 %55, %v38
  %v57 = vpop.permute.xlu0 %56
  %60 = vset.pattern.permute.xlu0 0
  %61 = vperm.xlu0 %60, %v39
  %v62 = vpop.permute.xlu0 %61
  %65 = vset.pattern.permute.xlu0 0
  %66 = vperm.xlu0 %65, %v40
  %v67 = vpop.permute.xlu0 %66
  %70 = vset.pattern.permute.xlu0 0
  %71 = vperm.xlu0 %70, %v41
  %v72 = vpop.permute.xlu0 %71
  %75 = vset.pattern.permute.xlu0 0
  %76 = vperm.xlu0 %75, %v42
  %v77 = vpop.permute.xlu0 %76
  %80 = vset.pattern.permute.xlu0 0
  %81 = vperm.xlu0 %80, %v43
  %v82 = vpop.permute.xlu0 %81
  %v92 = vunpack.c.l.b16 %v28
  %v93 = vunpack.c.l.b16 %v29
  %v94 = vunpack.c.l.b16 %v30
  %v95 = vunpack.c.l.b16 %v31
  %v96 = vunpack.c.l.b16 %v32
  %v97 = vunpack.c.l.b16 %v33
  %v98 = vunpack.c.l.b16 %v34
  %v99 = vunpack.c.l.b16 %v35
  %v100 = vpack.c.b16 %v93, %v92
  %v101 = vpack.c.b16 %v95, %v94
  %v102 = vpack.c.b16 %v97, %v96
  %v103 = vpack.c.b16 %v99, %v98
  %vm104 = vcmask 64512
  %v106 = vsel %vm104, %v100, 0
  %v109 = vsel %vm104, %v101, 0
  %v112 = vsel %vm104, %v102, 0
  %v115 = vsel %vm104, %v103, 0
  %vm117 = vcmask 1043456
  %v119 = vsel %vm117, %v27, 0
  %121 = vmatprep.subr.bf16.mxu0 0
  %122 = vmatpush1.bf16.msra.mxu0 0
  %123 = vmatprep.subr.bf16.mxu0 0
  %124 = vmatpush1.bf16.msra.mxu0 0
  %125 = vmatprep.subr.bf16.mxu0 0
  %126 = vmatpush1.bf16.msra.mxu0 0
  %127 = vmatprep.subr.bf16.mxu0 0
  %128 = vmatpush1.bf16.msra.mxu0 0
  %129 = vmatprep.subr.bf16.mxu0 0
  %130 = vmatpush1.bf16.msra.mxu0 0
  %131 = vmatprep.subr.bf16.mxu0 0
  %132 = vmatpush1.bf16.msra.mxu0 0
  %133 = vmatprep.subr.bf16.mxu0 0
  %134 = vmatpush1.bf16.msra.mxu0 0
  %135 = vmatprep.subr.bf16.mxu0 0
  %136 = vmatpush1.bf16.msra.mxu0 %v119
  %137 = vmatprep.subr.bf16.mxu0 0
  %138 = vmatpush2.bf16.msra.mxu0 0
  %139 = vmatprep.subr.bf16.mxu0 0
  %140 = vmatpush2.bf16.msra.mxu0 0
  %141 = vmatprep.subr.bf16.mxu0 0
  %142 = vmatpush2.bf16.msra.mxu0 0
  %143 = vmatprep.subr.bf16.mxu0 0
  %144 = vmatpush2.bf16.msra.mxu0 0
  %145 = vmatprep.subr.bf16.mxu0 0
  %146 = vmatpush2.bf16.msra.mxu0 0
  %147 = vmatprep.subr.bf16.mxu0 0
  %148 = vmatpush2.bf16.msra.mxu0 0
  %149 = vmatprep.subr.bf16.mxu0 0
  %150 = vmatpush2.bf16.msra.mxu0 0
  %151 = vmatprep.subr.bf16.mxu0 0
  %152 = vmatpush2.bf16.msra.mxu0 0
  %153 = vmatprep.mubr.bf16.mxu0 0
  %154 = vmatmul.mubr.bf16.gmra.mxu0 %v106
  %v155 = vpop.f32.mrf.mxu0
  %v156 = vadd.f32 %v47, %v155
  %v157 = vpop.f32.mrf.mxu0
  %v158 = vpop.f32.mrf.mxu0
  %v159 = vadd.f32 %v52, %v158
  %v160 = vpop.f32.mrf.mxu0
  %161 = vmatprep.mubr.bf16.mxu0 0
  %162 = vmatmul.mubr.bf16.gmra.mxu0 %v109
  %v163 = vpop.f32.mrf.mxu0
  %v164 = vadd.f32 %v57, %v163
  %v165 = vpop.f32.mrf.mxu0
  %v166 = vpop.f32.mrf.mxu0
  %v167 = vadd.f32 %v62, %v166
  %v168 = vpop.f32.mrf.mxu0
  %169 = vmatprep.mubr.bf16.mxu0 0
  %170 = vmatmul.mubr.bf16.gmra.mxu0 %v112
  %v171 = vpop.f32.mrf.mxu0
  %v172 = vadd.f32 %v67, %v171
  %v173 = vpop.f32.mrf.mxu0
  %v174 = vpop.f32.mrf.mxu0
  %v175 = vadd.f32 %v72, %v174
  %v176 = vpop.f32.mrf.mxu0
  %177 = vmatprep.mubr.bf16.mxu0 0
  %178 = vmatmul.mubr.bf16.gmra.mxu0 %v115
  %v179 = vpop.f32.mrf.mxu0
  %v180 = vadd.f32 %v77, %v179
  %v181 = vpop.f32.mrf.mxu0
  %v182 = vpop.f32.mrf.mxu0
  %v183 = vadd.f32 %v82, %v182
  %v184 = vpop.f32.mrf.mxu0
  %185 = vdwg.mxu0
  %v186 = vmax.f32 %v156, 0.0
  %v187 = vmax.f32 %v159, 0.0
  %v188 = vmax.f32 %v164, 0.0
  %v189 = vmax.f32 %v167, 0.0
  %v190 = vmax.f32 %v172, 0.0
  %v191 = vmax.f32 %v175, 0.0
  %v192 = vmax.f32 %v180, 0.0
  %v193 = vmax.f32 %v183, 0.0
  %v194 = vld [vmem:[%s3] sm:$0xf]
  %v195 = vld [vmem:[%s3 + $0x4] sm:$0xf]
  %v196 = vld [vmem:[%s3 + $0x8] sm:$0xf]
  %v197 = vld [vmem:[%s3 + $0xc] sm:$0xf]
  %v198 = vpack.c.bf16 %v187, %v186
  %v199 = vpack.c.bf16 %v189, %v188
  %v200 = vpack.c.bf16 %v191, %v190
  %v201 = vpack.c.bf16 %v193, %v192
  %v202 = vld [vmem:[%s4] sm:$0xff]
  %v203 = vld [vmem:[%s4 + $0x8] sm:$0xff]
  %v204 = vld [vmem:[%s4 + $0x10] sm:$0xff]
  %v205 = vld [vmem:[%s4 + $0x18] sm:$0xff]
  %207 = vset.pattern.permute.xlu0 0
  %208 = vperm.xlu0 %207, %v202
  %v209 = vpop.permute.xlu0 %208
  %212 = vset.pattern.permute.xlu0 0
  %213 = vperm.xlu0 %212, %v203
  %v214 = vpop.permute.xlu0 %213
  %217 = vset.pattern.permute.xlu0 0
  %218 = vperm.xlu0 %217, %v204
  %v219 = vpop.permute.xlu0 %218
  %222 = vset.pattern.permute.xlu0 0
  %223 = vperm.xlu0 %222, %v205
  %v224 = vpop.permute.xlu0 %223
  %v230 = vunpack.c.l.b16 %v194
  %v231 = vunpack.c.l.b16 %v195
  %v232 = vunpack.c.l.b16 %v196
  %v233 = vunpack.c.l.b16 %v197
  %v234 = vpack.c.b16 %v231, %v230
  %v235 = vpack.c.b16 %v233, %v232
  %vm236 = vcmask 523264
  %v238 = vsel %vm236, %v234, 0
  %v241 = vsel %vm236, %v235, 0
  %243 = vmatprep.subr.bf16.mxu0 0
  %244 = vmatpush1.bf16.msra.mxu0 0
  %245 = vmatprep.subr.bf16.mxu0 0
  %246 = vmatpush1.bf16.msra.mxu0 0
  %247 = vmatprep.subr.bf16.mxu0 0
  %248 = vmatpush1.bf16.msra.mxu0 0
  %249 = vmatprep.subr.bf16.mxu0 0
  %250 = vmatpush1.bf16.msra.mxu0 0
  %251 = vmatprep.subr.bf16.mxu0 0
  %252 = vmatpush1.bf16.msra.mxu0 %v201
  %253 = vmatprep.subr.bf16.mxu0 0
  %254 = vmatpush1.bf16.msra.mxu0 %v200
  %255 = vmatprep.subr.bf16.mxu0 0
  %256 = vmatpush1.bf16.msra.mxu0 %v199
  %257 = vmatprep.subr.bf16.mxu0 0
  %258 = vmatpush1.bf16.msra.mxu0 %v198
  %259 = vmatprep.subr.bf16.mxu0 0
  %260 = vmatpush2.bf16.msra.mxu0 0
  %261 = vmatprep.subr.bf16.mxu0 0
  %262 = vmatpush2.bf16.msra.mxu0 0
  %263 = vmatprep.subr.bf16.mxu0 0
  %264 = vmatpush2.bf16.msra.mxu0 0
  %265 = vmatprep.subr.bf16.mxu0 0
  %266 = vmatpush2.bf16.msra.mxu0 0
  %267 = vmatprep.subr.bf16.mxu0 0
  %268 = vmatpush2.bf16.msra.mxu0 0
  %269 = vmatprep.subr.bf16.mxu0 0
  %270 = vmatpush2.bf16.msra.mxu0 0
  %271 = vmatprep.subr.bf16.mxu0 0
  %272 = vmatpush2.bf16.msra.mxu0 0
  %273 = vmatprep.subr.bf16.mxu0 0
  %274 = vmatpush2.bf16.msra.mxu0 0
  %275 = vmatprep.mubr.bf16.mxu0 0
  %276 = vmatmul.mubr.bf16.gmra.mxu0 %v238
  %v277 = vpop.f32.mrf.mxu0
  %v278 = vadd.f32 %v209, %v277
  %v279 = vpop.f32.mrf.mxu0
  %v280 = vpop.f32.mrf.mxu0
  %v281 = vadd.f32 %v214, %v280
  %v282 = vpop.f32.mrf.mxu0
  %283 = vmatprep.mubr.bf16.mxu0 0
  %284 = vmatmul.mubr.bf16.gmra.mxu0 %v241
  %v285 = vpop.f32.mrf.mxu0
  %v286 = vadd.f32 %v219, %v285
  %v287 = vpop.f32.mrf.mxu0
  %v288 = vpop.f32.mrf.mxu0
  %v289 = vadd.f32 %v224, %v288
  %v290 = vpop.f32.mrf.mxu0
  %291 = vdwg.mxu0
  %v292 = vmax.f32 %v278, 0.0
  %v293 = vmax.f32 %v281, 0.0
  %v294 = vmax.f32 %v286, 0.0
  %v295 = vmax.f32 %v289, 0.0
  %v296 = vld [vmem:[%s5] sm:$0xf]
  %v297 = vpack.c.bf16 %v293, %v292
  %v298 = vpack.c.bf16 %v295, %v294
  %v299 = vld [vmem:[%s6] sm:$0xff]
  %301 = vset.pattern.permute.xlu0 0
  %302 = vperm.xlu0 %301, %v299
  %v303 = vpop.permute.xlu0 %302
  %vm305 = vcmask 261120
  %v307 = vsel %vm305, %v296, 0
  %309 = vmatprep.subr.bf16.mxu0 0
  %310 = vmatpush1.bf16.msra.mxu0 0
  %311 = vmatprep.subr.bf16.mxu0 0
  %312 = vmatpush1.bf16.msra.mxu0 0
  %313 = vmatprep.subr.bf16.mxu0 0
  %314 = vmatpush1.bf16.msra.mxu0 0
  %315 = vmatprep.subr.bf16.mxu0 0
  %316 = vmatpush1.bf16.msra.mxu0 0
  %317 = vmatprep.subr.bf16.mxu0 0
  %318 = vmatpush1.bf16.msra.mxu0 0
  %319 = vmatprep.subr.bf16.mxu0 0
  %320 = vmatpush1.bf16.msra.mxu0 0
  %321 = vmatprep.subr.bf16.mxu0 0
  %322 = vmatpush1.bf16.msra.mxu0 %v298
  %323 = vmatprep.subr.bf16.mxu0 0
  %324 = vmatpush1.bf16.msra.mxu0 %v297
  %325 = vmatprep.subr.bf16.mxu0 0
  %326 = vmatpush2.bf16.msra.mxu0 0
  %327 = vmatprep.subr.bf16.mxu0 0
  %328 = vmatpush2.bf16.msra.mxu0 0
  %329 = vmatprep.subr.bf16.mxu0 0
  %330 = vmatpush2.bf16.msra.mxu0 0
  %331 = vmatprep.subr.bf16.mxu0 0
  %332 = vmatpush2.bf16.msra.mxu0 0
  %333 = vmatprep.subr.bf16.mxu0 0
  %334 = vmatpush2.bf16.msra.mxu0 0
  %335 = vmatprep.subr.bf16.mxu0 0
  %336 = vmatpush2.bf16.msra.mxu0 0
  %337 = vmatprep.subr.bf16.mxu0 0
  %338 = vmatpush2.bf16.msra.mxu0 0
  %339 = vmatprep.subr.bf16.mxu0 0
  %340 = vmatpush2.bf16.msra.mxu0 0
  %341 = vmatprep.mubr.bf16.mxu0 0
  %342 = vmatmul.mubr.bf16.gmra.mxu0 %v307
  %v343 = vpop.f32.mrf.mxu0
  %v344 = vadd.f32 %v303, %v343
  %v345 = vpop.f32.mrf.mxu0
  %v346 = vpop.f32.mrf.mxu0
  %v347 = vpop.f32.mrf.mxu0
  %348 = vdwg.mxu0
  %349 = vst [vmem:[%s7] sm:$0xff] %v344
  // Predicated region
  $region30: #{behavior_classifier_forward.1} parent=0 // pred_check
    _
  $region31: #{behavior_classifier_forward.1} parent=0 // pred_check_branch
    %351 = sbr.rel (0) target = $region33
  $region32: #{behavior_classifier_forward.1} parent=0 // pred_region
    _
  $region33: #{behavior_classifier_forward.1} parent=0 // pred_fallthru
    _
  // Predicated region
  $region34: #{behavior_classifier_forward.1} parent=0 // pred_check
    _
  $region35: #{behavior_classifier_forward.1} parent=0 // pred_check_branch
    %353 = sbr.rel (0) target = $region37
  $region36: #{behavior_classifier_forward.1} parent=0 // pred_region
    _
  $region37: #{behavior_classifier_forward.1} parent=0 // pred_fallthru
    _

</llo_original>
